<compile_context>
chip_gen: v7x
topology: tpu7x:2x2x1
jax: 0.10.0
libtpu: 0.0.40
codegen_flags: <defaults>
</compile_context>

<pallas_src>
import functools
import math

import jax
import jax.numpy as jnp
from jax.experimental import pallas as pl
from jax.experimental.pallas import tpu as pltpu

GAMMA = 1e-10
_LANES = 128  # lane width of the flattened 2-D view


def _bpr_loss_kernel(pos_ref, neg_ref, out_ref, *, block_rows, width,
                     full_rows, rem_cols, needs_mask):
    # Elementwise math in f32 on the VPU/EUP; one amortized reduce per big block.
    diff = pos_ref[...].astype(jnp.float32) - neg_ref[...].astype(jnp.float32)
    vals = -jnp.log(jnp.float32(GAMMA) + jax.nn.sigmoid(diff))

    if needs_mask:
        i = pl.program_id(0)
        row = i * block_rows + jax.lax.broadcasted_iota(
            jnp.int32, (block_rows, width), 0)
        col = jax.lax.broadcasted_iota(jnp.int32, (block_rows, width), 1)
        valid = row < full_rows
        if rem_cols:
            valid = valid | ((row == full_rows) & (col < rem_cols))
        vals = jnp.where(valid, vals, jnp.float32(0.0))

    # Per-block partial sum -> this block's own output cell (SMEM scalar).
    out_ref[0, 0] = jnp.sum(vals)


def bpr_loss(pos_scores, neg_scores, *, max_block_bytes_per_input=2 * 1024 * 1024):
    """Pallas TPU implementation of BPRLoss.forward (returns a scalar)."""
    assert pos_scores.shape == neg_scores.shape, "pos/neg must have same shape"
    total = math.prod(pos_scores.shape)
    assert total > 0

    width = _LANES
    rows = pl.cdiv(total, width)

    # Biggest block that keeps 2 inputs x 2 pipeline buffers ~<= 8 MiB resident.
    budget_rows = max(8, max_block_bytes_per_input // (width * 4))
    block_rows = min(budget_rows, max(8, rows))
    block_rows = max(8, (block_rows // 8) * 8)  # sublane-aligned

    grid_rows = pl.cdiv(rows, block_rows)
    padded_rows = grid_rows * block_rows
    padded_total = padded_rows * width

    pos = jnp.ravel(pos_scores)
    neg = jnp.ravel(neg_scores)
    needs_mask = padded_total != total
    if needs_mask:
        pad = padded_total - total
        pos = jnp.pad(pos, (0, pad))
        neg = jnp.pad(neg, (0, pad))
    pos2 = pos.reshape(padded_rows, width)
    neg2 = neg.reshape(padded_rows, width)

    kernel = functools.partial(
        _bpr_loss_kernel,
        block_rows=block_rows,
        width=width,
        full_rows=total // width,
        rem_cols=total % width,
        needs_mask=needs_mask,
    )

    partials = pl.pallas_call(
        kernel,
        out_shape=jax.ShapeDtypeStruct((grid_rows, 1), jnp.float32),
        grid=(grid_rows,),
        in_specs=[
            pl.BlockSpec((block_rows, width), lambda i: (i, 0)),
            pl.BlockSpec((block_rows, width), lambda i: (i, 0)),
        ],
        out_specs=pl.BlockSpec((1, 1), lambda i: (i, 0),
                               memory_space=pltpu.SMEM),
        compiler_params=pltpu.CompilerParams(
            dimension_semantics=("parallel",),   # independent partials: both TCs on v7x
            vmem_limit_bytes=32 * 1024 * 1024,   # headroom on every generation
        ),
    )(pos2, neg2)

    # Tiny final reduction + mean in plain JAX.
    return jnp.sum(partials) / jnp.float32(total)


def bpr_loss_ref(pos_scores, neg_scores):
    return -jnp.mean(jnp.log(GAMMA + jax.nn.sigmoid(pos_scores - neg_scores)))


if __name__ == "__main__":
    key = jax.random.PRNGKey(0)
    k1, k2 = jax.random.split(key)

    # Case 1: lane-aligned scores, batch=16 users x 128 sampled items.
    pos_scores = jax.random.normal(k1, (16, 128), dtype=jnp.float32)
    neg_scores = jax.random.normal(k2, (16, 128), dtype=jnp.float32)
    loss = bpr_loss(pos_scores, neg_scores)
    jax.block_until_ready(loss)
    ref = bpr_loss_ref(pos_scores, neg_scores)
    assert jnp.allclose(loss, ref, atol=1e-5, rtol=1e-5), (loss, ref)

    # Case 2: ragged / non-aligned shape exercising the padding + mask path.
    k3, k4 = jax.random.split(k2)
    pos_r = jax.random.normal(k3, (7, 50), dtype=jnp.float32)
    neg_r = jax.random.normal(k4, (7, 50), dtype=jnp.float32)
    loss_r = bpr_loss(pos_r, neg_r)
    jax.block_until_ready(loss_r)
    ref_r = bpr_loss_ref(pos_r, neg_r)
    assert jnp.allclose(loss_r, ref_r, atol=1e-5, rtol=1e-5), (loss_r, ref_r)

    print("KERNEL_OK")
</pallas_src>

<mosaic_0001>
module attributes {stable_mosaic.version = 11 : i64} {
  func.func @_bpr_loss_kernel(%arg0: i32, %arg1: memref<16x128xf32, #tpu.memory_space<vmem>>, %arg2: memref<16x128xf32, #tpu.memory_space<vmem>>, %arg3: memref<1x1xf32, #tpu.memory_space<smem>>) attributes {dimension_semantics = [#tpu.dimension_semantics<parallel>], iteration_bounds = array<i64: 1>, scalar_prefetch = 0 : i64, scratch_operands = 0 : i64, tpu.core_type = #tpu.core_type<tc>, window_params = [{transform_indices = @transform_0, window_bounds = array<i64: 16, 128>}, {transform_indices = @transform_1, window_bounds = array<i64: 16, 128>}, {transform_indices = @transform_2, window_bounds = array<i64: 1, 1>}]} {
    %c0 = arith.constant 0 : index
    %c0_0 = arith.constant 0 : index
    %0 = vector.load %arg1[%c0, %c0_0] : memref<16x128xf32, #tpu.memory_space<vmem>>, vector<16x128xf32>
    %c0_1 = arith.constant 0 : index
    %c0_2 = arith.constant 0 : index
    %1 = vector.load %arg2[%c0_1, %c0_2] : memref<16x128xf32, #tpu.memory_space<vmem>>, vector<16x128xf32>
    %2 = arith.subf %0, %1 : vector<16x128xf32>
    %3 = arith.negf %2 : vector<16x128xf32>
    %4 = math.exp %3 : vector<16x128xf32>
    %cst = arith.constant 1.000000e+00 : f32
    %5 = vector.broadcast %cst : f32 to vector<16x128xf32>
    %6 = arith.addf %5, %4 : vector<16x128xf32>
    %7 = arith.divf %5, %6 : vector<16x128xf32>
    %cst_3 = arith.constant 1.000000e-10 : f32
    %8 = vector.broadcast %cst_3 : f32 to vector<16x128xf32>
    %9 = arith.addf %8, %7 : vector<16x128xf32>
    %10 = math.log %9 : vector<16x128xf32>
    %cst_4 = arith.constant 0.000000e+00 : f32
    %11 = vector.broadcast %cst_4 : f32 to vector<16x128xf32>
    %12 = arith.subf %11, %10 : vector<16x128xf32>
    %13 = vector.shape_cast %12 : vector<16x128xf32> to vector<1x16x128xf32>
    %cst_5 = arith.constant dense<0.000000e+00> : vector<1xf32>
    %14 = vector.multi_reduction <add>, %13, %cst_5 [1, 2] : vector<1x16x128xf32> to vector<1xf32>
    %15 = vector.shape_cast %14 : vector<1xf32> to vector<1x1x1xf32>
    %16 = vector.extract %15[0, 0, 0] : f32 from vector<1x1x1xf32>
    %c0_6 = arith.constant 0 : index
    %c0_7 = arith.constant 0 : index
    %17 = memref.load %arg3[%c0_6, %c0_7] : memref<1x1xf32, #tpu.memory_space<smem>>
    memref.store %16, %arg3[%c0_6, %c0_7] : memref<1x1xf32, #tpu.memory_space<smem>>
    return
  }
  func.func @transform_0(%arg0: i32) -> (i32, i32) {
    %c0_i32 = arith.constant 0 : i32
    %c0_i32_0 = arith.constant 0 : i32
    return %arg0, %c0_i32 : i32, i32
  }
  func.func @transform_1(%arg0: i32) -> (i32, i32) {
    %c0_i32 = arith.constant 0 : i32
    %c0_i32_0 = arith.constant 0 : i32
    return %arg0, %c0_i32 : i32, i32
  }
  func.func @transform_2(%arg0: i32) -> (i32, i32) {
    %c0_i32 = arith.constant 0 : i32
    %c0_i32_0 = arith.constant 0 : i32
    return %arg0, %c0_i32 : i32, i32
  }
}

</mosaic_0001>

<llo_original>
// kernel: tpu_custom_call.1
$region0: #{tpu_custom_call.1}
  #allocation0 [shape = 'u32[]', space=smem, size = 0x4, offset = 0x4, fixed_abs, tag = 'smem constant byte address 0x4 - core index']
  #allocation1 [shape = 'u32[144,128]{1,0:T(1,128)}', space=vmem, size = 0x12000, scoped, tag = 'internal scratch']
  %s0 = inlined_call_operand.hbm [shape: f32[16,128], index: 0, kind: input, shape index: {}]
  %s1 = inlined_call_operand.hbm [shape: f32[16,128], index: 1, kind: input, shape index: {}]
  %s2 = inlined_call_operand.hbm [shape: f32[1,1], index: 2, kind: output, shape index: {}]
  %s3 = sld [smem:[#allocation0]]
  $region26: #{tpu_custom_call.1} parent=0
    _
  %s5 = ssub.s32 1, %s3
  %s6 = scalar_select 0, %s5, %s3
  $region1: #{tpu_custom_call.1} parent=0
    #allocation2 [shape = 'u8[8192]{0}', space=vmem, size = 0x2000, scoped, tag = 'input window, operand 0, single buffered']
    #allocation3 [shape = 's32[1]{0}', space=sflag, size = 0x4, scoped, tag = 'scoped memory for tpu_custom_call.1']
    #allocation4 [shape = 's32[1]{0}', space=sflag, size = 0x4, scoped, tag = 'scoped memory for tpu_custom_call.1']
    #allocation5 [shape = 'u8[8192]{0}', space=vmem, size = 0x2000, scoped, tag = 'input window, operand 1, single buffered']
    #allocation6 [shape = 's32[1]{0}', space=sflag, size = 0x4, scoped, tag = 'scoped memory for tpu_custom_call.1']
    #allocation7 [shape = 'u8[512]{0}', space=smem, size = 0x200, scoped, tag = 'output window, operand 0, single buffered']
    %7 = vsyncpa [#allocation3], 0
    %8 = vsyncpa [#allocation6], 0
    %9 = vsyncpa [#allocation4], 0
    // Predicated region
    $region2: #{tpu_custom_call.1} parent=1 // pred_check
      _
    $region3: #{tpu_custom_call.1} parent=1 // pred_check_branch
      %11 = sbr.rel (0) target = $region5
    $region4: #{tpu_custom_call.1} parent=1 // pred_region
      %s13 = ssub.s32 256, 256
      %14 = vsyncadd [#allocation3], %s13
      %s15 = sshll.u32 [#allocation2], 4
      %s16 = int_to_ptr.vmem [resolvable:$true] %s15
      %21 = dma.hbm_to_vmem [thread:$0]  %s0, 256, %s16, [#allocation3], 128, 128, 8
    $region5: #{tpu_custom_call.1} parent=1 // pred_fallthru
      _
    // Predicated region
    $region6: #{tpu_custom_call.1} parent=1 // pred_check
      _
    $region7: #{tpu_custom_call.1} parent=1 // pred_check_branch
      %23 = sbr.rel (0) target = $region9
    $region8: #{tpu_custom_call.1} parent=1 // pred_region
      %s25 = ssub.s32 256, 256
      %26 = vsyncadd [#allocation6], %s25
      %s27 = sshll.u32 [#allocation5], 4
      %s28 = int_to_ptr.vmem [resolvable:$true] %s27
      %33 = dma.hbm_to_vmem [thread:$0]  %s1, 256, %s28, [#allocation6], 128, 128, 8
    $region9: #{tpu_custom_call.1} parent=1 // pred_fallthru
      _
    // Predicated region
    $region10: #{tpu_custom_call.1} parent=1 // pred_check
      _
    $region11: #{tpu_custom_call.1} parent=1 // pred_check_branch
      %35 = sbr.rel (0) target = $region13
    $region12: #{tpu_custom_call.1} parent=1 // pred_region
      %36 = dma.done [#allocation3], 256
    $region13: #{tpu_custom_call.1} parent=1 // pred_fallthru
      _
    // Predicated region
    $region14: #{tpu_custom_call.1} parent=1 // pred_check
      _
    $region15: #{tpu_custom_call.1} parent=1 // pred_check_branch
      %38 = sbr.rel (0) target = $region17
    $region16: #{tpu_custom_call.1} parent=1 // pred_region
      %39 = dma.done [#allocation6], 256
    $region17: #{tpu_custom_call.1} parent=1 // pred_fallthru
      _
    %v40 = vld [vmem:[#allocation2] sm:$0xff]
    %v41 = vld [vmem:[#allocation2 + $0x8] sm:$0xff]
    %v42 = vld [vmem:[#allocation5] sm:$0xff]
    %v43 = vld [vmem:[#allocation5 + $0x8] sm:$0xff]
    %v44 = vsub.f32 %v40, %v42
    %v45 = vsub.f32 %v41, %v43
    %v46 = vxor.u32 %v44, 2147483648
    %v47 = vxor.u32 %v45, 2147483648
    %v48 = vmul.f32 %v46, 1.442695
    %v49 = vpow.pop %v48
    %v50 = vmul.f32 %v47, 1.442695
    %v51 = vpow.pop %v50
    %v52 = vadd.f32 %v49, 1.0
    %v53 = vadd.f32 %v51, 1.0
    %v54 = vrcp.pop %v52
    %v55 = vmul.f32 1.0, %v54
    %v56 = vrcp.pop %v53
    %v57 = vmul.f32 1.0, %v56
    %v58 = vadd.f32 %v55, 1e-10
    %v59 = vadd.f32 %v57, 1e-10
    %v60 = vlog2.pop %v58
    %v61 = vmul.f32 %v60, 0.6931472
    %v62 = vlog2.pop %v59
    %v63 = vmul.f32 %v62, 0.6931472
    %v64 = vsub.f32 0.0, %v61
    %v65 = vsub.f32 0.0, %v63
    %v66 = vadd.f32 %v64, %v65
    %67 = vadd.xlane.f32.xlu0 %v66
    %v68 = vpop.xlane.xlu0 %67
    %v69 = vrot.slane %v68, 4
    %v70 = vadd.f32 %v68, %v69
    %v71 = vrot.slane %v70, 2
    %v72 = vadd.f32 %v70, %v71
    %v73 = vrot.slane %v72, 1
    %v74 = vadd.f32 %v72, %v73
    %s75 = vtos %v74
    %s76 = scalar_lea.smem [#allocation7], 0
    %77 = sst [smem:[%s76]] %s75
    // Predicated region
    $region18: #{tpu_custom_call.1} parent=1 // pred_check
      _
    $region19: #{tpu_custom_call.1} parent=1 // pred_check_branch
      %79 = sbr.rel (0) target = $region21
    $region20: #{tpu_custom_call.1} parent=1 // pred_region
      %s81 = ssub.s32 16, 16
      %82 = vsyncadd [#allocation4], %s81
      %85 = dma.smem_to_hbm [#allocation7], 16, %s2, [#allocation4]
    $region21: #{tpu_custom_call.1} parent=1 // pred_fallthru
      _
    // Predicated region
    $region22: #{tpu_custom_call.1} parent=1 // pred_check
      _
    $region23: #{tpu_custom_call.1} parent=1 // pred_check_branch
      %87 = sbr.rel (0) target = $region25
    $region24: #{tpu_custom_call.1} parent=1 // pred_region
      %88 = dma.done [#allocation4], 16
    $region25: #{tpu_custom_call.1} parent=1 // pred_fallthru
      _
    %89 = sfence
    %90 = vsyncpa [#allocation3], 1
    %91 = vsyncpa [#allocation6], 1
    %92 = vsyncpa [#allocation4], 1

</llo_original>
